<compile_context>
chip_gen: v5e
topology: v5e:2x2
jax: 0.10.0
libtpu: 0.0.40
codegen_flags: <defaults>
</compile_context>

<pallas_src>
import functools

import jax
import jax.numpy as jnp
from jax.experimental import pallas as pl
from jax.experimental.pallas import tpu as pltpu

_LANES = 128
_MAX_TILE_ROWS = 1024      # rows x 128 lanes per map per grid step
_MIN_GRID_STEPS = 8        # keep enough steps for megacore / 2-TC sharding


# ----------------------------------------------------------------------------
# OHEM (online hard example mining) -- plain JAX glue.
# TODO(synk): the data-dependent k-th order statistic has no clean Pallas TPU
# primitive; it stays in XLA, but as an O(n) radix select instead of a sort.
# ----------------------------------------------------------------------------
def _kth_largest_masked(score_flat, neg_mask, k):
    """Exact k-th largest (1-indexed, traced k>=1) of score_flat[neg_mask].

    Radix select over the order-preserving uint32 image of float32:
    4 passes of 256-bin histograms, O(n) total.
    """
    bits = jax.lax.bitcast_convert_type(score_flat, jnp.uint32)
    sign = (bits >> 31) != 0
    key = jnp.where(sign, ~bits, bits | jnp.uint32(0x80000000))

    prefix = jnp.uint32(0)
    kk = k.astype(jnp.int32)
    for r in range(4):
        shift = 24 - 8 * r
        if r == 0:
            match = neg_mask
        else:
            hi = shift + 8
            match = neg_mask & ((key >> hi) == (prefix >> hi))
        digit = ((key >> shift) & jnp.uint32(0xFF)).astype(jnp.int32)
        hist = jnp.zeros((256,), jnp.int32).at[digit].add(match.astype(jnp.int32))
        cum = jnp.cumsum(hist[::-1])[::-1]            # cum[d] = #elems with digit >= d
        d_sel = jnp.sum((cum >= kk).astype(jnp.int32)) - 1
        d_sel = jnp.clip(d_sel, 0, 255)
        greater = jnp.where(d_sel >= 255, 0, cum[jnp.minimum(d_sel + 1, 255)])
        kk = kk - greater
        prefix = prefix | (d_sel.astype(jnp.uint32) << shift)

    thr_bits = jnp.where(prefix >= jnp.uint32(0x80000000),
                         prefix ^ jnp.uint32(0x80000000), ~prefix)
    return jax.lax.bitcast_convert_type(thr_bits, jnp.float32)


def ohem_batch_jax(scores, gt_texts, training_masks):
    """scores, gt_texts, training_masks: [B, H, W] -> selected mask [B, H, W] f32."""

    def ohem_single(score, gt, tm):
        pos = gt > 0.5
        pos_num = jnp.sum(pos) - jnp.sum(pos & (tm <= 0.5))
        neg = gt <= 0.5
        neg_total = jnp.sum(neg)
        neg_num = jnp.minimum(pos_num * 3, neg_total)

        k = jnp.maximum(neg_num, 1).astype(jnp.int32)
        threshold = _kth_largest_masked(score.reshape(-1), neg.reshape(-1), k)

        sel = ((score >= threshold) | (gt > 0.5)) & (tm > 0.5)
        sel = sel.astype(jnp.float32)

        fallback = (pos_num == 0) | (neg_num == 0)
        return jnp.where(fallback, tm.astype(jnp.float32), sel)

    return jax.vmap(ohem_single)(scores, gt_texts, training_masks)


# ----------------------------------------------------------------------------
# Pallas kernel: per-(image, row-tile) dice partial sums.
# ----------------------------------------------------------------------------
def _pse_partial_kernel(texts_ref, gt_texts_ref, sel_ref, tmask_ref,
                        kernels_ref, gt_kernels_ref, out_ref):
    # Blocks:
    #   texts/gt_texts/sel/tmask : (1, tile_r, 128)
    #   kernels/gt_kernels       : (1, Kn, tile_r, 128)
    #   out                      : (1, 1, nq_pad, 128)
    texts = texts_ref[0].astype(jnp.float32)
    gt_texts = gt_texts_ref[0].astype(jnp.float32)     # strictly {0,1}
    sel = sel_ref[0].astype(jnp.float32)               # strictly {0,1}
    tmask = tmask_ref[0].astype(jnp.float32)           # strictly {0,1}

    sig_t = jax.nn.sigmoid(texts)

    def store_abc(base, sig, tgt, mask):
        # tgt/mask in {0,1}  =>  ip*tp == sig*tp, ip*ip == sig*sig*mask, tp*tp == tp
        tp = tgt * mask
        out_ref[0, 0, pl.ds(base + 0, 1), :] = jnp.sum(sig * tp, axis=0, keepdims=True)
        out_ref[0, 0, pl.ds(base + 1, 1), :] = jnp.sum(sig * sig * mask, axis=0,
                                                       keepdims=True)
        out_ref[0, 0, pl.ds(base + 2, 1), :] = jnp.sum(tp, axis=0, keepdims=True)

    # Text dice partials (OHEM mask).
    store_abc(0, sig_t, gt_texts, sel)

    # Kernel-selection mask: (sigmoid(texts) > 0.5) & (training_mask > 0.5).
    sel_k = jnp.logical_and(sig_t > 0.5, tmask > 0.5).astype(jnp.float32)

    kn = kernels_ref.shape[1]                          # static
    for i in range(kn):
        sig_k = jax.nn.sigmoid(kernels_ref[0, i].astype(jnp.float32))
        gt_k = gt_kernels_ref[0, i].astype(jnp.float32)
        store_abc(3 + 3 * i, sig_k, gt_k, sel_k)

    nq = 3 * (1 + kn)
    nq_pad = out_ref.shape[2]
    if nq_pad > nq:                                    # zero the sublane-pad tail
        out_ref[0, 0, pl.ds(nq, nq_pad - nq), :] = jnp.zeros(
            (nq_pad - nq, _LANES), jnp.float32)


# ----------------------------------------------------------------------------
# Wrapper.
# ----------------------------------------------------------------------------
def _ceil_to(x, m):
    return -(-x // m) * m


def _to_lane_rows(x, rows_pad):
    """[..., N] -> [..., rows_pad, 128] with zero padding (no dtype change)."""
    n = x.shape[-1]
    pad = rows_pad * _LANES - n
    if pad:
        x = jnp.pad(x, [(0, 0)] * (x.ndim - 1) + [(0, pad)])
    return x.reshape(x.shape[:-1] + (rows_pad, _LANES))


@functools.partial(jax.jit, static_argnames=("kernel_num", "text_loss_ratio"))
def pse_loss(texts, gt_texts, kernels, gt_kernels, training_masks,
             kernel_num, text_loss_ratio=0.7):
    """Pallas-backed PseLoss forward. Returns a scalar float32 loss.

    gt_texts / gt_kernels / training_masks must be strictly {0,1}-valued
    (as in PSENet); the kernel exploits this for the dice partial sums.
    """
    del kernel_num  # implied by kernels.shape[1] (= kernel_num - 1)
    B, H, W = texts.shape
    Kn = kernels.shape[1]
    n = H * W
    nq = 3 * (1 + Kn)
    nq_pad = _ceil_to(nq, 8)                     # sublane-aligned output rows

    # OHEM selection (data-dependent order statistic) in plain JAX.
    # bf16 carriage of the 0/1 mask is exact and its cast fuses into OHEM.
    sel_text = ohem_batch_jax(texts, gt_texts, training_masks)

    # --- row tiling ---------------------------------------------------------
    rows = -(-n // _LANES)
    rows16 = _ceil_to(rows, 16)
    # number of row tiles: respect the VMEM tile cap, minimize pad waste, and
    # keep >= _MIN_GRID_STEPS total grid steps when the image is big enough.
    num_tiles = max(-(-rows16 // _MAX_TILE_ROWS),
                    min(-(-_MIN_GRID_STEPS // B), max(rows16 // 16, 1)))
    tile_r = _ceil_to(-(-rows16 // num_tiles), 16)
    rows_pad = num_tiles * tile_r

    # Lane-dense inputs; NO wrapper-side dtype casts (kernel upcasts in-register).
    texts_p = _to_lane_rows(texts.reshape(B, n), rows_pad)
    gt_texts_p = _to_lane_rows(gt_texts.reshape(B, n), rows_pad)
    sel_p = _to_lane_rows(sel_text.reshape(B, n).astype(jnp.bfloat16), rows_pad)
    tmask_p = _to_lane_rows(training_masks.reshape(B, n), rows_pad)
    kernels_p = _to_lane_rows(kernels.reshape(B, Kn, n), rows_pad)
    gt_kernels_p = _to_lane_rows(gt_kernels.reshape(B, Kn, n), rows_pad)

    map3 = pl.BlockSpec((1, tile_r, _LANES), lambda b, t: (b, t, 0))
    map4 = pl.BlockSpec((1, Kn, tile_r, _LANES), lambda b, t: (b, 0, t, 0))
    out_spec = pl.BlockSpec((1, 1, nq_pad, _LANES), lambda b, t: (b, t, 0, 0))

    # VMEM budget: 2x (double-buffered) per-step blocks + output, +25% headroom.
    bytes_per_px = (texts_p.dtype.itemsize + gt_texts_p.dtype.itemsize
                    + sel_p.dtype.itemsize + tmask_p.dtype.itemsize
                    + Kn * (kernels_p.dtype.itemsize + gt_kernels_p.dtype.itemsize))
    in_block_bytes = tile_r * _LANES * bytes_per_px
    out_block_bytes = nq_pad * _LANES * 4
    vmem_bytes = int(1.25 * 2 * (in_block_bytes + out_block_bytes)) + (2 << 20)
    vmem_bytes = min(max(vmem_bytes, 16 << 20), 48 << 20)   # v7x-safe (<64 MiB)

    partials = pl.pallas_call(
        _pse_partial_kernel,
        out_shape=jax.ShapeDtypeStruct((B, num_tiles, nq_pad, _LANES), jnp.float32),
        grid_spec=pltpu.PrefetchScalarGridSpec(
            num_scalar_prefetch=0,
            grid=(B, num_tiles),
            in_specs=[map3, map3, map3, map3, map4, map4],
            out_specs=out_spec,
        ),
        compiler_params=pltpu.CompilerParams(
            dimension_semantics=("parallel", "parallel"),
            vmem_limit_bytes=vmem_bytes),
    )(texts_p, gt_texts_p, sel_p, tmask_p, kernels_p, gt_kernels_p)

    # Tiny final combine in XLA (~100 FLOPs).
    sums = jnp.sum(partials, axis=(1, 3))       # [B, nq_pad] f32

    def dice_from(a, b, c):
        return 1.0 - jnp.mean(2.0 * a / ((b + 0.001) + (c + 0.001)))

    loss_text = dice_from(sums[:, 0], sums[:, 1], sums[:, 2])
    loss_kernel = 0.0
    for i in range(Kn):
        o = 3 + 3 * i
        loss_kernel = loss_kernel + dice_from(sums[:, o], sums[:, o + 1], sums[:, o + 2])
    loss_kernel = loss_kernel / Kn

    return text_loss_ratio * loss_text + (1.0 - text_loss_ratio) * loss_kernel


# ----------------------------------------------------------------------------
# Pure-JAX reference (original math, sort-based OHEM) for a sanity check.
# This independently validates both the Pallas dice partials and the
# radix-select OHEM threshold.
# ----------------------------------------------------------------------------
def _ohem_batch_sort_ref(scores, gt_texts, training_masks):
    def ohem_single(score, gt, tm):
        pos = gt > 0.5
        pos_num = jnp.sum(pos) - jnp.sum(pos & (tm <= 0.5))
        neg = gt <= 0.5
        neg_total = jnp.sum(neg)
        neg_num = jnp.minimum(pos_num * 3, neg_total)
        flat = score.reshape(-1)
        neg_scores = jnp.where(neg.reshape(-1), flat, -jnp.inf)
        sorted_desc = jnp.sort(neg_scores)[::-1]
        idx = jnp.clip(neg_num - 1, 0, flat.size - 1)
        threshold = sorted_desc[idx]
        sel = ((score >= threshold) | (gt > 0.5)) & (tm > 0.5)
        fallback = (pos_num == 0) | (neg_num == 0)
        return jnp.where(fallback, tm.astype(jnp.float32), sel.astype(jnp.float32))

    return jax.vmap(ohem_single)(scores, gt_texts, training_masks)


def _pse_loss_ref(texts, gt_texts, kernels, gt_kernels, training_masks,
                  text_loss_ratio=0.7):
    sel_text = _ohem_batch_sort_ref(texts, gt_texts, training_masks)

    def dice(inp, tgt, mask):
        ip = jax.nn.sigmoid(inp) * mask
        tp = tgt * mask
        a = jnp.sum(ip * tp, axis=(1, 2))
        b = jnp.sum(ip * ip, axis=(1, 2)) + 0.001
        c = jnp.sum(tp * tp, axis=(1, 2)) + 0.001
        return 1.0 - jnp.mean(2.0 * a / (b + c))

    loss_text = dice(texts, gt_texts, sel_text)
    sel_k = ((jax.nn.sigmoid(texts) > 0.5) & (training_masks > 0.5)).astype(jnp.float32)
    kn = kernels.shape[1]
    loss_kernel = sum(dice(kernels[:, i], gt_kernels[:, i], sel_k) for i in range(kn)) / kn
    return text_loss_ratio * loss_text + (1.0 - text_loss_ratio) * loss_kernel


if __name__ == "__main__":
    B, H, W = 2, 16, 16
    kernel_num = 3                     # -> kernel_num - 1 = 2 kernel maps
    Kn = kernel_num - 1

    key = jax.random.PRNGKey(0)
    k1, k2, k3, k4, k5 = jax.random.split(key, 5)

    texts = jax.random.normal(k1, (B, H, W), dtype=jnp.float32)
    gt_texts = (jax.random.uniform(k2, (B, H, W)) > 0.5).astype(jnp.float32)
    kernels = jax.random.normal(k3, (B, Kn, H, W), dtype=jnp.float32)
    gt_kernels = (jax.random.uniform(k4, (B, Kn, H, W)) > 0.5).astype(jnp.float32)
    training_masks = (jax.random.uniform(k5, (B, H, W)) > 0.1).astype(jnp.float32)

    loss = pse_loss(texts, gt_texts, kernels, gt_kernels, training_masks,
                    kernel_num=kernel_num, text_loss_ratio=0.7)
    loss = jax.block_until_ready(loss)

    ref = jax.block_until_ready(
        _pse_loss_ref(texts, gt_texts, kernels, gt_kernels, training_masks, 0.7))
    assert jnp.allclose(loss, ref, atol=1e-5, rtol=1e-5), (loss, ref)

    print("KERNEL_OK")
</pallas_src>

<mosaic_0001>
module attributes {stable_mosaic.version = 11 : i64} {
  func.func @_pse_partial_kernel(%arg0: i32, %arg1: i32, %arg2: memref<1x16x128xf32, #tpu.memory_space<vmem>>, %arg3: memref<1x16x128xf32, #tpu.memory_space<vmem>>, %arg4: memref<1x16x128xbf16, #tpu.memory_space<vmem>>, %arg5: memref<1x16x128xf32, #tpu.memory_space<vmem>>, %arg6: memref<1x2x16x128xf32, #tpu.memory_space<vmem>>, %arg7: memref<1x2x16x128xf32, #tpu.memory_space<vmem>>, %arg8: memref<1x1x16x128xf32, #tpu.memory_space<vmem>>) attributes {dimension_semantics = [#tpu.dimension_semantics<parallel>, #tpu.dimension_semantics<parallel>], iteration_bounds = array<i64: 2, 1>, scalar_prefetch = 0 : i64, scratch_operands = 0 : i64, tpu.core_type = #tpu.core_type<tc>, window_params = [{transform_indices = @transform_0, window_bounds = array<i64: 1, 16, 128>}, {transform_indices = @transform_1, window_bounds = array<i64: 1, 16, 128>}, {transform_indices = @transform_2, window_bounds = array<i64: 1, 16, 128>}, {transform_indices = @transform_3, window_bounds = array<i64: 1, 16, 128>}, {transform_indices = @transform_4, window_bounds = array<i64: 1, 2, 16, 128>}, {transform_indices = @transform_5, window_bounds = array<i64: 1, 2, 16, 128>}, {transform_indices = @transform_6, window_bounds = array<i64: 1, 1, 16, 128>}]} {
    %c0 = arith.constant 0 : index
    %c0_0 = arith.constant 0 : index
    %c0_1 = arith.constant 0 : index
    %0 = vector.load %arg2[%c0, %c0_0, %c0_1] : memref<1x16x128xf32, #tpu.memory_space<vmem>>, vector<1x16x128xf32>
    %1 = vector.shape_cast %0 : vector<1x16x128xf32> to vector<16x128xf32>
    %c0_2 = arith.constant 0 : index
    %c0_3 = arith.constant 0 : index
    %c0_4 = arith.constant 0 : index
    %2 = vector.load %arg3[%c0_2, %c0_3, %c0_4] : memref<1x16x128xf32, #tpu.memory_space<vmem>>, vector<1x16x128xf32>
    %3 = vector.shape_cast %2 : vector<1x16x128xf32> to vector<16x128xf32>
    %c0_5 = arith.constant 0 : index
    %c0_6 = arith.constant 0 : index
    %c0_7 = arith.constant 0 : index
    %4 = vector.load %arg4[%c0_5, %c0_6, %c0_7] : memref<1x16x128xbf16, #tpu.memory_space<vmem>>, vector<1x16x128xbf16>
    %5 = vector.shape_cast %4 : vector<1x16x128xbf16> to vector<16x128xbf16>
    %6 = arith.extf %5 : vector<16x128xbf16> to vector<16x128xf32>
    %c0_8 = arith.constant 0 : index
    %c0_9 = arith.constant 0 : index
    %c0_10 = arith.constant 0 : index
    %7 = vector.load %arg5[%c0_8, %c0_9, %c0_10] : memref<1x16x128xf32, #tpu.memory_space<vmem>>, vector<1x16x128xf32>
    %8 = vector.shape_cast %7 : vector<1x16x128xf32> to vector<16x128xf32>
    %9 = arith.negf %1 : vector<16x128xf32>
    %10 = math.exp %9 : vector<16x128xf32>
    %cst = arith.constant 1.000000e+00 : f32
    %11 = vector.broadcast %cst : f32 to vector<16x128xf32>
    %12 = arith.addf %11, %10 : vector<16x128xf32>
    %13 = arith.divf %11, %12 : vector<16x128xf32>
    %14 = arith.mulf %3, %6 : vector<16x128xf32>
    %15 = arith.mulf %13, %14 : vector<16x128xf32>
    %cst_11 = arith.constant dense<0.000000e+00> : vector<128xf32>
    %16 = vector.multi_reduction <add>, %15, %cst_11 [0] : vector<16x128xf32> to vector<128xf32>
    %17 = vector.shape_cast %16 : vector<128xf32> to vector<1x128xf32>
    %c0_12 = arith.constant 0 : index
    %c0_13 = arith.constant 0 : index
    %c0_14 = arith.constant 0 : index
    %c0_15 = arith.constant 0 : index
    %18 = vector.load %arg8[%c0_12, %c0_13, %c0_14, %c0_15] : memref<1x1x16x128xf32, #tpu.memory_space<vmem>>, vector<1x1x1x128xf32>
    %19 = vector.shape_cast %18 : vector<1x1x1x128xf32> to vector<1x128xf32>
    %20 = vector.shape_cast %17 : vector<1x128xf32> to vector<1x1x1x128xf32>
    tpu.vector_store %arg8[%c0_12, %c0_13, %c0_14, %c0_15], %20 {strides = array<i32>} : memref<1x1x16x128xf32, #tpu.memory_space<vmem>>, vector<1x1x1x128xf32>,
    %21 = arith.mulf %13, %13 : vector<16x128xf32>
    %22 = arith.mulf %21, %6 : vector<16x128xf32>
    %cst_16 = arith.constant dense<0.000000e+00> : vector<128xf32>
    %23 = vector.multi_reduction <add>, %22, %cst_16 [0] : vector<16x128xf32> to vector<128xf32>
    %24 = vector.shape_cast %23 : vector<128xf32> to vector<1x128xf32>
    %c0_17 = arith.constant 0 : index
    %c0_18 = arith.constant 0 : index
    %c1 = arith.constant 1 : index
    %c0_19 = arith.constant 0 : index
    %25 = vector.load %arg8[%c0_17, %c0_18, %c1, %c0_19] : memref<1x1x16x128xf32, #tpu.memory_space<vmem>>, vector<1x1x1x128xf32>
    %26 = vector.shape_cast %25 : vector<1x1x1x128xf32> to vector<1x128xf32>
    %27 = vector.shape_cast %24 : vector<1x128xf32> to vector<1x1x1x128xf32>
    tpu.vector_store %arg8[%c0_17, %c0_18, %c1, %c0_19], %27 {strides = array<i32>} : memref<1x1x16x128xf32, #tpu.memory_space<vmem>>, vector<1x1x1x128xf32>,
    %cst_20 = arith.constant dense<0.000000e+00> : vector<128xf32>
    %28 = vector.multi_reduction <add>, %14, %cst_20 [0] : vector<16x128xf32> to vector<128xf32>
    %29 = vector.shape_cast %28 : vector<128xf32> to vector<1x128xf32>
    %c0_21 = arith.constant 0 : index
    %c0_22 = arith.constant 0 : index
    %c2 = arith.constant 2 : index
    %c0_23 = arith.constant 0 : index
    %30 = vector.load %arg8[%c0_21, %c0_22, %c2, %c0_23] : memref<1x1x16x128xf32, #tpu.memory_space<vmem>>, vector<1x1x1x128xf32>
    %31 = vector.shape_cast %30 : vector<1x1x1x128xf32> to vector<1x128xf32>
    %32 = vector.shape_cast %29 : vector<1x128xf32> to vector<1x1x1x128xf32>
    tpu.vector_store %arg8[%c0_21, %c0_22, %c2, %c0_23], %32 {strides = array<i32>} : memref<1x1x16x128xf32, #tpu.memory_space<vmem>>, vector<1x1x1x128xf32>,
    %cst_24 = arith.constant 5.000000e-01 : f32
    %33 = vector.broadcast %cst_24 : f32 to vector<16x128xf32>
    %34 = arith.cmpf ogt, %13, %33 : vector<16x128xf32>
    %cst_25 = arith.constant 5.000000e-01 : f32
    %35 = vector.broadcast %cst_25 : f32 to vector<16x128xf32>
    %36 = arith.cmpf ogt, %8, %35 : vector<16x128xf32>
    %37 = arith.andi %34, %36 : vector<16x128xi1>
    %38 = arith.extui %37 : vector<16x128xi1> to vector<16x128xi32>
    %39 = arith.sitofp %38 : vector<16x128xi32> to vector<16x128xf32>
    %c0_26 = arith.constant 0 : index
    %c0_27 = arith.constant 0 : index
    %c0_28 = arith.constant 0 : index
    %c0_29 = arith.constant 0 : index
    %40 = vector.load %arg6[%c0_26, %c0_27, %c0_28, %c0_29] : memref<1x2x16x128xf32, #tpu.memory_space<vmem>>, vector<1x1x16x128xf32>
    %41 = vector.shape_cast %40 : vector<1x1x16x128xf32> to vector<16x128xf32>
    %42 = arith.negf %41 : vector<16x128xf32>
    %43 = math.exp %42 : vector<16x128xf32>
    %cst_30 = arith.constant 1.000000e+00 : f32
    %44 = vector.broadcast %cst_30 : f32 to vector<16x128xf32>
    %45 = arith.addf %44, %43 : vector<16x128xf32>
    %46 = arith.divf %44, %45 : vector<16x128xf32>
    %c0_31 = arith.constant 0 : index
    %c0_32 = arith.constant 0 : index
    %c0_33 = arith.constant 0 : index
    %c0_34 = arith.constant 0 : index
    %47 = vector.load %arg7[%c0_31, %c0_32, %c0_33, %c0_34] : memref<1x2x16x128xf32, #tpu.memory_space<vmem>>, vector<1x1x16x128xf32>
    %48 = vector.shape_cast %47 : vector<1x1x16x128xf32> to vector<16x128xf32>
    %49 = arith.mulf %48, %39 : vector<16x128xf32>
    %50 = arith.mulf %46, %49 : vector<16x128xf32>
    %cst_35 = arith.constant dense<0.000000e+00> : vector<128xf32>
    %51 = vector.multi_reduction <add>, %50, %cst_35 [0] : vector<16x128xf32> to vector<128xf32>
    %52 = vector.shape_cast %51 : vector<128xf32> to vector<1x128xf32>
    %c0_36 = arith.constant 0 : index
    %c0_37 = arith.constant 0 : index
    %c3 = arith.constant 3 : index
    %c0_38 = arith.constant 0 : index
    %53 = vector.load %arg8[%c0_36, %c0_37, %c3, %c0_38] : memref<1x1x16x128xf32, #tpu.memory_space<vmem>>, vector<1x1x1x128xf32>
    %54 = vector.shape_cast %53 : vector<1x1x1x128xf32> to vector<1x128xf32>
    %55 = vector.shape_cast %52 : vector<1x128xf32> to vector<1x1x1x128xf32>
    tpu.vector_store %arg8[%c0_36, %c0_37, %c3, %c0_38], %55 {strides = array<i32>} : memref<1x1x16x128xf32, #tpu.memory_space<vmem>>, vector<1x1x1x128xf32>,
    %56 = arith.mulf %46, %46 : vector<16x128xf32>
    %57 = arith.mulf %56, %39 : vector<16x128xf32>
    %cst_39 = arith.constant dense<0.000000e+00> : vector<128xf32>
    %58 = vector.multi_reduction <add>, %57, %cst_39 [0] : vector<16x128xf32> to vector<128xf32>
    %59 = vector.shape_cast %58 : vector<128xf32> to vector<1x128xf32>
    %c0_40 = arith.constant 0 : index
    %c0_41 = arith.constant 0 : index
    %c4 = arith.constant 4 : index
    %c0_42 = arith.constant 0 : index
    %60 = vector.load %arg8[%c0_40, %c0_41, %c4, %c0_42] : memref<1x1x16x128xf32, #tpu.memory_space<vmem>>, vector<1x1x1x128xf32>
    %61 = vector.shape_cast %60 : vector<1x1x1x128xf32> to vector<1x128xf32>
    %62 = vector.shape_cast %59 : vector<1x128xf32> to vector<1x1x1x128xf32>
    tpu.vector_store %arg8[%c0_40, %c0_41, %c4, %c0_42], %62 {strides = array<i32>} : memref<1x1x16x128xf32, #tpu.memory_space<vmem>>, vector<1x1x1x128xf32>,
    %cst_43 = arith.constant dense<0.000000e+00> : vector<128xf32>
    %63 = vector.multi_reduction <add>, %49, %cst_43 [0] : vector<16x128xf32> to vector<128xf32>
    %64 = vector.shape_cast %63 : vector<128xf32> to vector<1x128xf32>
    %c0_44 = arith.constant 0 : index
    %c0_45 = arith.constant 0 : index
    %c5 = arith.constant 5 : index
    %c0_46 = arith.constant 0 : index
    %65 = vector.load %arg8[%c0_44, %c0_45, %c5, %c0_46] : memref<1x1x16x128xf32, #tpu.memory_space<vmem>>, vector<1x1x1x128xf32>
    %66 = vector.shape_cast %65 : vector<1x1x1x128xf32> to vector<1x128xf32>
    %67 = vector.shape_cast %64 : vector<1x128xf32> to vector<1x1x1x128xf32>
    tpu.vector_store %arg8[%c0_44, %c0_45, %c5, %c0_46], %67 {strides = array<i32>} : memref<1x1x16x128xf32, #tpu.memory_space<vmem>>, vector<1x1x1x128xf32>,
    %c0_47 = arith.constant 0 : index
    %c1_48 = arith.constant 1 : index
    %c0_49 = arith.constant 0 : index
    %c0_50 = arith.constant 0 : index
    %68 = vector.load %arg6[%c0_47, %c1_48, %c0_49, %c0_50] : memref<1x2x16x128xf32, #tpu.memory_space<vmem>>, vector<1x1x16x128xf32>
    %69 = vector.shape_cast %68 : vector<1x1x16x128xf32> to vector<16x128xf32>
    %70 = arith.negf %69 : vector<16x128xf32>
    %71 = math.exp %70 : vector<16x128xf32>
    %cst_51 = arith.constant 1.000000e+00 : f32
    %72 = vector.broadcast %cst_51 : f32 to vector<16x128xf32>
    %73 = arith.addf %72, %71 : vector<16x128xf32>
    %74 = arith.divf %72, %73 : vector<16x128xf32>
    %c0_52 = arith.constant 0 : index
    %c1_53 = arith.constant 1 : index
    %c0_54 = arith.constant 0 : index
    %c0_55 = arith.constant 0 : index
    %75 = vector.load %arg7[%c0_52, %c1_53, %c0_54, %c0_55] : memref<1x2x16x128xf32, #tpu.memory_space<vmem>>, vector<1x1x16x128xf32>
    %76 = vector.shape_cast %75 : vector<1x1x16x128xf32> to vector<16x128xf32>
    %77 = arith.mulf %76, %39 : vector<16x128xf32>
    %78 = arith.mulf %74, %77 : vector<16x128xf32>
    %cst_56 = arith.constant dense<0.000000e+00> : vector<128xf32>
    %79 = vector.multi_reduction <add>, %78, %cst_56 [0] : vector<16x128xf32> to vector<128xf32>
    %80 = vector.shape_cast %79 : vector<128xf32> to vector<1x128xf32>
    %c0_57 = arith.constant 0 : index
    %c0_58 = arith.constant 0 : index
    %c6 = arith.constant 6 : index
    %c0_59 = arith.constant 0 : index
    %81 = vector.load %arg8[%c0_57, %c0_58, %c6, %c0_59] : memref<1x1x16x128xf32, #tpu.memory_space<vmem>>, vector<1x1x1x128xf32>
    %82 = vector.shape_cast %81 : vector<1x1x1x128xf32> to vector<1x128xf32>
    %83 = vector.shape_cast %80 : vector<1x128xf32> to vector<1x1x1x128xf32>
    tpu.vector_store %arg8[%c0_57, %c0_58, %c6, %c0_59], %83 {strides = array<i32>} : memref<1x1x16x128xf32, #tpu.memory_space<vmem>>, vector<1x1x1x128xf32>,
    %84 = arith.mulf %74, %74 : vector<16x128xf32>
    %85 = arith.mulf %84, %39 : vector<16x128xf32>
    %cst_60 = arith.constant dense<0.000000e+00> : vector<128xf32>
    %86 = vector.multi_reduction <add>, %85, %cst_60 [0] : vector<16x128xf32> to vector<128xf32>
    %87 = vector.shape_cast %86 : vector<128xf32> to vector<1x128xf32>
    %c0_61 = arith.constant 0 : index
    %c0_62 = arith.constant 0 : index
    %c7 = arith.constant 7 : index
    %c0_63 = arith.constant 0 : index
    %88 = vector.load %arg8[%c0_61, %c0_62, %c7, %c0_63] : memref<1x1x16x128xf32, #tpu.memory_space<vmem>>, vector<1x1x1x128xf32>
    %89 = vector.shape_cast %88 : vector<1x1x1x128xf32> to vector<1x128xf32>
    %90 = vector.shape_cast %87 : vector<1x128xf32> to vector<1x1x1x128xf32>
    tpu.vector_store %arg8[%c0_61, %c0_62, %c7, %c0_63], %90 {strides = array<i32>} : memref<1x1x16x128xf32, #tpu.memory_space<vmem>>, vector<1x1x1x128xf32>,
    %cst_64 = arith.constant dense<0.000000e+00> : vector<128xf32>
    %91 = vector.multi_reduction <add>, %77, %cst_64 [0] : vector<16x128xf32> to vector<128xf32>
    %92 = vector.shape_cast %91 : vector<128xf32> to vector<1x128xf32>
    %c0_65 = arith.constant 0 : index
    %c0_66 = arith.constant 0 : index
    %c8 = arith.constant 8 : index
    %c0_67 = arith.constant 0 : index
    %93 = vector.load %arg8[%c0_65, %c0_66, %c8, %c0_67] : memref<1x1x16x128xf32, #tpu.memory_space<vmem>>, vector<1x1x1x128xf32>
    %94 = vector.shape_cast %93 : vector<1x1x1x128xf32> to vector<1x128xf32>
    %95 = vector.shape_cast %92 : vector<1x128xf32> to vector<1x1x1x128xf32>
    tpu.vector_store %arg8[%c0_65, %c0_66, %c8, %c0_67], %95 {strides = array<i32>} : memref<1x1x16x128xf32, #tpu.memory_space<vmem>>, vector<1x1x1x128xf32>,
    %cst_68 = arith.constant 0.000000e+00 : f32
    %96 = vector.broadcast %cst_68 : f32 to vector<7x128xf32>
    %c0_69 = arith.constant 0 : index
    %c0_70 = arith.constant 0 : index
    %c9 = arith.constant 9 : index
    %c0_71 = arith.constant 0 : index
    %97 = vector.load %arg8[%c0_69, %c0_70, %c9, %c0_71] : memref<1x1x16x128xf32, #tpu.memory_space<vmem>>, vector<1x1x7x128xf32>
    %98 = vector.shape_cast %97 : vector<1x1x7x128xf32> to vector<7x128xf32>
    %99 = vector.shape_cast %96 : vector<7x128xf32> to vector<1x1x7x128xf32>
    tpu.vector_store %arg8[%c0_69, %c0_70, %c9, %c0_71], %99 {strides = array<i32>} : memref<1x1x16x128xf32, #tpu.memory_space<vmem>>, vector<1x1x7x128xf32>,
    return
  }
  func.func @transform_0(%arg0: i32, %arg1: i32) -> (i32, i32, i32) {
    %c0_i32 = arith.constant 0 : i32
    %c0_i32_0 = arith.constant 0 : i32
    return %arg0, %arg1, %c0_i32 : i32, i32, i32
  }
  func.func @transform_1(%arg0: i32, %arg1: i32) -> (i32, i32, i32) {
    %c0_i32 = arith.constant 0 : i32
    %c0_i32_0 = arith.constant 0 : i32
    return %arg0, %arg1, %c0_i32 : i32, i32, i32
  }
  func.func @transform_2(%arg0: i32, %arg1: i32) -> (i32, i32, i32) {
    %c0_i32 = arith.constant 0 : i32
    %c0_i32_0 = arith.constant 0 : i32
    return %arg0, %arg1, %c0_i32 : i32, i32, i32
  }
  func.func @transform_3(%arg0: i32, %arg1: i32) -> (i32, i32, i32) {
    %c0_i32 = arith.constant 0 : i32
    %c0_i32_0 = arith.constant 0 : i32
    return %arg0, %arg1, %c0_i32 : i32, i32, i32
  }
  func.func @transform_4(%arg0: i32, %arg1: i32) -> (i32, i32, i32, i32) {
    %c0_i32 = arith.constant 0 : i32
    %c0_i32_0 = arith.constant 0 : i32
    %c0_i32_1 = arith.constant 0 : i32
    return %arg0, %c0_i32, %arg1, %c0_i32_0 : i32, i32, i32, i32
  }
  func.func @transform_5(%arg0: i32, %arg1: i32) -> (i32, i32, i32, i32) {
    %c0_i32 = arith.constant 0 : i32
    %c0_i32_0 = arith.constant 0 : i32
    %c0_i32_1 = arith.constant 0 : i32
    return %arg0, %c0_i32, %arg1, %c0_i32_0 : i32, i32, i32, i32
  }
  func.func @transform_6(%arg0: i32, %arg1: i32) -> (i32, i32, i32, i32) {
    %c0_i32 = arith.constant 0 : i32
    %c0_i32_0 = arith.constant 0 : i32
    %c0_i32_1 = arith.constant 0 : i32
    return %arg0, %arg1, %c0_i32, %c0_i32_0 : i32, i32, i32, i32
  }
}

</mosaic_0001>

<llo_original>
// kernel: pse_loss.1
$region0: #{pse_loss.1}
  #allocation0 [shape = 'u32[]', space=smem, size = 0x4, offset = 0x4, fixed_abs, tag = 'smem constant byte address 0x4 - core index']
  #allocation1 [shape = 'u32[72,128]{1,0:T(1,128)}', space=vmem, size = 0x9000, scoped, tag = 'internal scratch']
  %s0 = inlined_call_operand.vmem [shape: f32[2,16,128], index: 0, kind: input, shape index: {}]
  %s1 = inlined_call_operand.vmem [shape: f32[2,16,128], index: 1, kind: input, shape index: {}]
  %s2 = inlined_call_operand.vmem [shape: bf16[2,16,128], index: 2, kind: input, shape index: {}]
  %s3 = inlined_call_operand.vmem [shape: f32[2,16,128], index: 3, kind: input, shape index: {}]
  %s4 = inlined_call_operand.vmem [shape: f32[2,2,16,128], index: 4, kind: input, shape index: {}]
  %s5 = inlined_call_operand.vmem [shape: f32[2,2,16,128], index: 5, kind: input, shape index: {}]
  %s6 = inlined_call_operand.vmem [shape: f32[2,1,16,128], index: 6, kind: output, shape index: {}]
  %s7 = sld [smem:[#allocation0]]
  $region57: #{pse_loss.1} parent=0
    _
  %s9 = ssub.s32 1, %s7
  %s10 = scalar_select 0, %s9, %s7
  loop: start=0, step=1, limit=4
  $region2: #{pse_loss.1} parent=0 // loop_pre_header
    _
  $region3: #{pse_loss.1} parent=0 // loop_header
    %s12 = sphi 0, %s16
    %p13 = scmp.ge.s32.totalorder %s12, 4
    %s19 = sphi 0, %s31
    %s20 = sphi 0, %s27
    %s21 = sphi 0, %s19
    %s22 = sphi 0, %s20
    %s23 = sphi 0, %s21
    %s24 = sphi 0, %s22
    %s36 = sphi 0, %s38
    %s39 = sphi 0, %s36
    %s40 = sphi 0, %s39
    %s56 = sphi 0, %s40
    %s64 = sphi 0, %s66
    %s67 = sphi 0, %s64
    %s68 = sphi 0, %s67
    %s84 = sphi 0, %s68
    %s92 = sphi 0, %s94
    %s95 = sphi 0, %s92
    %s96 = sphi 0, %s95
    %s112 = sphi 0, %s96
    %s120 = sphi 0, %s122
    %s123 = sphi 0, %s120
    %s124 = sphi 0, %s123
    %s140 = sphi 0, %s124
    %s148 = sphi 0, %s150
    %s151 = sphi 0, %s148
    %s152 = sphi 0, %s151
    %s168 = sphi 0, %s152
    %s176 = sphi 0, %s178
    %s179 = sphi 0, %s176
    %s180 = sphi 0, %s179
    %s196 = sphi 0, %s180
    %s204 = sphi 0, %s206
    %s207 = sphi 0, %s204
    %s208 = sphi 0, %s207
    %s224 = sphi 0, %s208
  $region4: #{pse_loss.1} parent=0 // loop_header_branch
    %15 = sbr.rel (%p13) target = $region8
  $region5: #{pse_loss.1} parent=0 // loop_body
    %s17 = ssub.s32 %s12, 1
    %s18 = ssub.s32 %s12, 2
    %s25 = sadd.s32 1, %s20
    %p26 = scmp.ge.s32.totalorder %s25, 1
    %s27 = scalar_select %p26, 0, %s25
    %s28 = sadd.s32 1, %s19
    %s29 = scalar_select %p26, %s28, %s19
    %p30 = scmp.ge.s32.totalorder %s29, 2
    %s31 = scalar_select %p30, 0, %s29
    %s32 = ssub.s32 %s19, %s31
    %s33 = ssub.s32 %s20, %s27
    %s34 = sor.u32 %s32, %s33
    %p35 = scmp.eq.s32.totalorder %s34, 0
    %s37 = sadd.s32 %s36, 1
    %s38 = scalar_select %p35, %s36, %s37
    %p41 = pneg %p35
    %p42 = scmp.eq.s32.totalorder %s12, 1
    %p43 = por %p41, %p42
    %p44 = scmp.ne.s32.totalorder %s36, %s39
    %p45 = scmp.eq.s32.totalorder %s12, 0
    %p46 = por %p44, %p45
    %p47 = scmp.ne.s32.totalorder %s36, %s39
    %p48 = scmp.eq.s32.totalorder %s17, 1
    %p49 = por %p47, %p48
    %p50 = scmp.ne.s32.totalorder %s39, %s40
    %p51 = scmp.eq.s32.totalorder %s17, 0
    %p52 = por %p50, %p51
    %p53 = scmp.ne.s32.totalorder %s39, %s40
    %p54 = scmp.eq.s32.totalorder %s18, 1
    %p55 = por %p53, %p54
    %p57 = scmp.ne.s32.totalorder %s40, %s56
    %p58 = scmp.eq.s32.totalorder %s18, 0
    %p59 = por %p57, %p58
    %s60 = ssub.s32 %s19, %s31
    %s61 = ssub.s32 %s20, %s27
    %s62 = sor.u32 %s60, %s61
    %p63 = scmp.eq.s32.totalorder %s62, 0
    %s65 = sadd.s32 %s64, 1
    %s66 = scalar_select %p63, %s64, %s65
    %p69 = pneg %p63
    %p70 = scmp.eq.s32.totalorder %s12, 1
    %p71 = por %p69, %p70
    %p72 = scmp.ne.s32.totalorder %s64, %s67
    %p73 = scmp.eq.s32.totalorder %s12, 0
    %p74 = por %p72, %p73
    %p75 = scmp.ne.s32.totalorder %s64, %s67
    %p76 = scmp.eq.s32.totalorder %s17, 1
    %p77 = por %p75, %p76
    %p78 = scmp.ne.s32.totalorder %s67, %s68
    %p79 = scmp.eq.s32.totalorder %s17, 0
    %p80 = por %p78, %p79
    %p81 = scmp.ne.s32.totalorder %s67, %s68
    %p82 = scmp.eq.s32.totalorder %s18, 1
    %p83 = por %p81, %p82
    %p85 = scmp.ne.s32.totalorder %s68, %s84
    %p86 = scmp.eq.s32.totalorder %s18, 0
    %p87 = por %p85, %p86
    %s88 = ssub.s32 %s19, %s31
    %s89 = ssub.s32 %s20, %s27
    %s90 = sor.u32 %s88, %s89
    %p91 = scmp.eq.s32.totalorder %s90, 0
    %s93 = sadd.s32 %s92, 1
    %s94 = scalar_select %p91, %s92, %s93
    %p97 = pneg %p91
    %p98 = scmp.eq.s32.totalorder %s12, 1
    %p99 = por %p97, %p98
    %p100 = scmp.ne.s32.totalorder %s92, %s95
    %p101 = scmp.eq.s32.totalorder %s12, 0
    %p102 = por %p100, %p101
    %p103 = scmp.ne.s32.totalorder %s92, %s95
    %p104 = scmp.eq.s32.totalorder %s17, 1
    %p105 = por %p103, %p104
    %p106 = scmp.ne.s32.totalorder %s95, %s96
    %p107 = scmp.eq.s32.totalorder %s17, 0
    %p108 = por %p106, %p107
    %p109 = scmp.ne.s32.totalorder %s95, %s96
    %p110 = scmp.eq.s32.totalorder %s18, 1
    %p111 = por %p109, %p110
    %p113 = scmp.ne.s32.totalorder %s96, %s112
    %p114 = scmp.eq.s32.totalorder %s18, 0
    %p115 = por %p113, %p114
    %s116 = ssub.s32 %s19, %s31
    %s117 = ssub.s32 %s20, %s27
    %s118 = sor.u32 %s116, %s117
    %p119 = scmp.eq.s32.totalorder %s118, 0
    %s121 = sadd.s32 %s120, 1
    %s122 = scalar_select %p119, %s120, %s121
    %p125 = pneg %p119
    %p126 = scmp.eq.s32.totalorder %s12, 1
    %p127 = por %p125, %p126
    %p128 = scmp.ne.s32.totalorder %s120, %s123
    %p129 = scmp.eq.s32.totalorder %s12, 0
    %p130 = por %p128, %p129
    %p131 = scmp.ne.s32.totalorder %s120, %s123
    %p132 = scmp.eq.s32.totalorder %s17, 1
    %p133 = por %p131, %p132
    %p134 = scmp.ne.s32.totalorder %s123, %s124
    %p135 = scmp.eq.s32.totalorder %s17, 0
    %p136 = por %p134, %p135
    %p137 = scmp.ne.s32.totalorder %s123, %s124
    %p138 = scmp.eq.s32.totalorder %s18, 1
    %p139 = por %p137, %p138
    %p141 = scmp.ne.s32.totalorder %s124, %s140
    %p142 = scmp.eq.s32.totalorder %s18, 0
    %p143 = por %p141, %p142
    %s144 = ssub.s32 %s19, %s31
    %s145 = ssub.s32 %s20, %s27
    %s146 = sor.u32 %s144, %s145
    %p147 = scmp.eq.s32.totalorder %s146, 0
    %s149 = sadd.s32 %s148, 1
    %s150 = scalar_select %p147, %s148, %s149
    %p153 = pneg %p147
    %p154 = scmp.eq.s32.totalorder %s12, 1
    %p155 = por %p153, %p154
    %p156 = scmp.ne.s32.totalorder %s148, %s151
    %p157 = scmp.eq.s32.totalorder %s12, 0
    %p158 = por %p156, %p157
    %p159 = scmp.ne.s32.totalorder %s148, %s151
    %p160 = scmp.eq.s32.totalorder %s17, 1
    %p161 = por %p159, %p160
    %p162 = scmp.ne.s32.totalorder %s151, %s152
    %p163 = scmp.eq.s32.totalorder %s17, 0
    %p164 = por %p162, %p163
    %p165 = scmp.ne.s32.totalorder %s151, %s152
    %p166 = scmp.eq.s32.totalorder %s18, 1
    %p167 = por %p165, %p166
    %p169 = scmp.ne.s32.totalorder %s152, %s168
    %p170 = scmp.eq.s32.totalorder %s18, 0
    %p171 = por %p169, %p170
    %s172 = ssub.s32 %s19, %s31
    %s173 = ssub.s32 %s20, %s27
    %s174 = sor.u32 %s172, %s173
    %p175 = scmp.eq.s32.totalorder %s174, 0
    %s177 = sadd.s32 %s176, 1
    %s178 = scalar_select %p175, %s176, %s177
    %p181 = pneg %p175
    %p182 = scmp.eq.s32.totalorder %s12, 1
    %p183 = por %p181, %p182
    %p184 = scmp.ne.s32.totalorder %s176, %s179
    %p185 = scmp.eq.s32.totalorder %s12, 0
    %p186 = por %p184, %p185
    %p187 = scmp.ne.s32.totalorder %s176, %s179
    %p188 = scmp.eq.s32.totalorder %s17, 1
    %p189 = por %p187, %p188
    %p190 = scmp.ne.s32.totalorder %s179, %s180
    %p191 = scmp.eq.s32.totalorder %s17, 0
    %p192 = por %p190, %p191
    %p193 = scmp.ne.s32.totalorder %s179, %s180
    %p194 = scmp.eq.s32.totalorder %s18, 1
    %p195 = por %p193, %p194
    %p197 = scmp.ne.s32.totalorder %s180, %s196
    %p198 = scmp.eq.s32.totalorder %s18, 0
    %p199 = por %p197, %p198
    %s200 = ssub.s32 %s19, %s31
    %s201 = ssub.s32 %s20, %s27
    %s202 = sor.u32 %s200, %s201
    %p203 = scmp.eq.s32.totalorder %s202, 0
    %s205 = sadd.s32 %s204, 1
    %s206 = scalar_select %p203, %s204, %s205
    %p209 = pneg %p203
    %p210 = scmp.eq.s32.totalorder %s12, 1
    %p211 = por %p209, %p210
    %p212 = scmp.ne.s32.totalorder %s204, %s207
    %p213 = scmp.eq.s32.totalorder %s12, 0
    %p214 = por %p212, %p213
    %p215 = scmp.ne.s32.totalorder %s204, %s207
    %p216 = scmp.eq.s32.totalorder %s17, 1
    %p217 = por %p215, %p216
    %p218 = scmp.ne.s32.totalorder %s207, %s208
    %p219 = scmp.eq.s32.totalorder %s17, 0
    %p220 = por %p218, %p219
    %p221 = scmp.ne.s32.totalorder %s207, %s208
    %p222 = scmp.eq.s32.totalorder %s18, 1
    %p223 = por %p221, %p222
    %p225 = scmp.ne.s32.totalorder %s208, %s224
    %p226 = scmp.eq.s32.totalorder %s18, 0
    %p227 = por %p225, %p226
    %p228 = scmp.le.s32.totalorder 1, %s12
    %p229 = scmp.lt.s32.totalorder %s12, 3
    %p230 = pnand %p228, %p229
    %p231 = pneg %p230
    // Predicated region
    $region9: #{pse_loss.1} parent=5 // pred_check
      _
    $region10: #{pse_loss.1} parent=5 // pred_check_branch
      %233 = sbr.rel (%p230) target = $region12
    $region11: #{pse_loss.1} parent=5 // pred_region
      %s234 = ssub.s32 %s12, 1
    $region12: #{pse_loss.1} parent=5 // pred_fallthru
      _
    %p235 = scmp.lt.s32.totalorder %s12, 2
    // Predicated region
    $region13: #{pse_loss.1} parent=5 // pred_check
      %p236 = pneg %p235
    $region14: #{pse_loss.1} parent=5 // pred_check_branch
      %238 = sbr.rel (%p236) target = $region16
    $region15: #{pse_loss.1} parent=5 // pred_region
      // Predicated region
      $region17: #{pse_loss.1} parent=15 // pred_check
        %p239 = pneg %p46
      $region18: #{pse_loss.1} parent=15 // pred_check_branch
        %241 = sbr.rel (%p239) target = $region20
      $region19: #{pse_loss.1} parent=15 // pred_region
        %s242 = smul.u32 2, %s20
        %p243 = scmp.lt.s32.totalorder %s19, 1
        %s244 = scalar_select %p243, %s19, 1
        %p245 = scmp.lt.s32.totalorder %s242, 1
        %s246 = scalar_select %p245, %s242, 1
        %s247 = smul.addr %s244, 2
        %s248 = sadd.s32 %s246, %s247
        %s249 = smul.addr %s248, 8
        %s250 = scalar_lea.vmem %s0, %s249
        %s251 = smul.u32 2, %s20
      $region20: #{pse_loss.1} parent=15 // pred_fallthru
        _
      // Predicated region
      $region21: #{pse_loss.1} parent=15 // pred_check
        %p252 = pneg %p74
      $region22: #{pse_loss.1} parent=15 // pred_check_branch
        %254 = sbr.rel (%p252) target = $region24
      $region23: #{pse_loss.1} parent=15 // pred_region
        %s255 = smul.u32 2, %s20
        %p256 = scmp.lt.s32.totalorder %s19, 1
        %s257 = scalar_select %p256, %s19, 1
        %p258 = scmp.lt.s32.totalorder %s255, 1
        %s259 = scalar_select %p258, %s255, 1
        %s260 = smul.addr %s257, 2
        %s261 = sadd.s32 %s259, %s260
        %s262 = smul.addr %s261, 8
        %s263 = scalar_lea.vmem %s1, %s262
        %s264 = smul.u32 2, %s20
      $region24: #{pse_loss.1} parent=15 // pred_fallthru
        _
      // Predicated region
      $region25: #{pse_loss.1} parent=15 // pred_check
        %p265 = pneg %p102
      $region26: #{pse_loss.1} parent=15 // pred_check_branch
        %267 = sbr.rel (%p265) target = $region28
      $region27: #{pse_loss.1} parent=15 // pred_region
        %s268 = smul.u32 2, %s20
        %p269 = scmp.lt.s32.totalorder %s19, 1
        %s270 = scalar_select %p269, %s19, 1
        %p271 = scmp.lt.s32.totalorder %s268, 1
        %s272 = scalar_select %p271, %s268, 1
        %s273 = smul.addr %s270, 2
        %s274 = sadd.s32 %s272, %s273
        %s275 = smul.addr %s274, 4
        %s276 = scalar_lea.vmem %s2, %s275
        %s277 = smul.u32 2, %s20
      $region28: #{pse_loss.1} parent=15 // pred_fallthru
        _
      // Predicated region
      $region29: #{pse_loss.1} parent=15 // pred_check
        %p278 = pneg %p130
      $region30: #{pse_loss.1} parent=15 // pred_check_branch
        %280 = sbr.rel (%p278) target = $region32
      $region31: #{pse_loss.1} parent=15 // pred_region
        %s281 = smul.u32 2, %s20
        %p282 = scmp.lt.s32.totalorder %s19, 1
        %s283 = scalar_select %p282, %s19, 1
        %p284 = scmp.lt.s32.totalorder %s281, 1
        %s285 = scalar_select %p284, %s281, 1
        %s286 = smul.addr %s283, 2
        %s287 = sadd.s32 %s285, %s286
        %s288 = smul.addr %s287, 8
        %s289 = scalar_lea.vmem %s3, %s288
        %s290 = smul.u32 2, %s20
      $region32: #{pse_loss.1} parent=15 // pred_fallthru
        _
      // Predicated region
      $region33: #{pse_loss.1} parent=15 // pred_check
        %p291 = pneg %p158
      $region34: #{pse_loss.1} parent=15 // pred_check_branch
        %293 = sbr.rel (%p291) target = $region36
      $region35: #{pse_loss.1} parent=15 // pred_region
        %s294 = smul.u32 2, %s20
        %p295 = scmp.lt.s32.totalorder %s19, 1
        %s296 = scalar_select %p295, %s19, 1
        %p297 = scmp.lt.s32.totalorder %s294, 1
        %s298 = scalar_select %p297, %s294, 1
        %s299 = smul.addr %s296, 4
        %s300 = sadd.s32 %s298, %s299
        %s301 = smul.addr %s300, 8
        %s302 = scalar_lea.vmem %s4, %s301
        %s303 = smul.u32 2, %s20
      $region36: #{pse_loss.1} parent=15 // pred_fallthru
        _
      // Predicated region
      $region37: #{pse_loss.1} parent=15 // pred_check
        %p304 = pneg %p186
      $region38: #{pse_loss.1} parent=15 // pred_check_branch
        %306 = sbr.rel (%p304) target = $region40
      $region39: #{pse_loss.1} parent=15 // pred_region
        %s307 = smul.u32 2, %s20
        %p308 = scmp.lt.s32.totalorder %s19, 1
        %s309 = scalar_select %p308, %s19, 1
        %p310 = scmp.lt.s32.totalorder %s307, 1
        %s311 = scalar_select %p310, %s307, 1
        %s312 = smul.addr %s309, 4
        %s313 = sadd.s32 %s311, %s312
        %s314 = smul.addr %s313, 8
        %s315 = scalar_lea.vmem %s5, %s314
        %s316 = smul.u32 2, %s20
      $region40: #{pse_loss.1} parent=15 // pred_fallthru
        _
    $region16: #{pse_loss.1} parent=5 // pred_fallthru
      _
    %p317 = scmp.le.s32.totalorder 1, %s12
    %p318 = scmp.lt.s32.totalorder %s12, 3
    %p319 = pnand %p317, %p318
    %p320 = pneg %p319
    // Predicated region
    $region41: #{pse_loss.1} parent=5 // pred_check
      _
    $region42: #{pse_loss.1} parent=5 // pred_check_branch
      %322 = sbr.rel (%p319) target = $region44
    $region43: #{pse_loss.1} parent=5 // pred_region
      %s323 = ssub.s32 %s12, 1
      %s324 = smul.u32 2, %s22
      %p325 = scmp.lt.s32.totalorder %s21, 1
      %s326 = scalar_select %p325, %s21, 1
      %p327 = scmp.lt.s32.totalorder %s324, 1
      %s328 = scalar_select %p327, %s324, 1
      %s329 = smul.addr %s326, 2
      %s330 = sadd.s32 %s328, %s329
      %s331 = smul.addr %s330, 8
      %s332 = scalar_lea.vmem %s0, %s331
      %p333 = pneg %p52
      %p334 = pneg %p49
      %s335 = smul.u32 2, %s22
      %p336 = scmp.lt.s32.totalorder %s21, 1
      %s337 = scalar_select %p336, %s21, 1
      %p338 = scmp.lt.s32.totalorder %s335, 1
      %s339 = scalar_select %p338, %s335, 1
      %s340 = smul.addr %s337, 2
      %s341 = sadd.s32 %s339, %s340
      %s342 = smul.addr %s341, 8
      %s343 = scalar_lea.vmem %s1, %s342
      %p344 = pneg %p80
      %p345 = pneg %p77
      %s346 = smul.u32 2, %s22
      %p347 = scmp.lt.s32.totalorder %s21, 1
      %s348 = scalar_select %p347, %s21, 1
      %p349 = scmp.lt.s32.totalorder %s346, 1
      %s350 = scalar_select %p349, %s346, 1
      %s351 = smul.addr %s348, 2
      %s352 = sadd.s32 %s350, %s351
      %s353 = smul.addr %s352, 4
      %s354 = scalar_lea.vmem %s2, %s353
      %p355 = pneg %p108
      %p356 = pneg %p105
      %s357 = smul.u32 2, %s22
      %p358 = scmp.lt.s32.totalorder %s21, 1
      %s359 = scalar_select %p358, %s21, 1
      %p360 = scmp.lt.s32.totalorder %s357, 1
      %s361 = scalar_select %p360, %s357, 1
      %s362 = smul.addr %s359, 2
      %s363 = sadd.s32 %s361, %s362
      %s364 = smul.addr %s363, 8
      %s365 = scalar_lea.vmem %s3, %s364
      %p366 = pneg %p136
      %p367 = pneg %p133
      %s368 = smul.u32 2, %s22
      %p369 = scmp.lt.s32.totalorder %s21, 1
      %s370 = scalar_select %p369, %s21, 1
      %p371 = scmp.lt.s32.totalorder %s368, 1
      %s372 = scalar_select %p371, %s368, 1
      %s373 = smul.addr %s370, 4
      %s374 = sadd.s32 %s372, %s373
      %s375 = smul.addr %s374, 8
      %s376 = scalar_lea.vmem %s4, %s375
      %p377 = pneg %p164
      %p378 = pneg %p161
      %s379 = smul.u32 2, %s22
      %p380 = scmp.lt.s32.totalorder %s21, 1
      %s381 = scalar_select %p380, %s21, 1
      %p382 = scmp.lt.s32.totalorder %s379, 1
      %s383 = scalar_select %p382, %s379, 1
      %s384 = smul.addr %s381, 4
      %s385 = sadd.s32 %s383, %s384
      %s386 = smul.addr %s385, 8
      %s387 = scalar_lea.vmem %s5, %s386
      %p388 = pneg %p192
      %p389 = pneg %p189
      %p390 = pneg %p220
      %p391 = pneg %p217
      %p392 = scmp.lt.s32.totalorder %s21, 1
      %s393 = scalar_select %p392, %s21, 1
      %p394 = scmp.lt.s32.totalorder %s22, 0
      %s395 = scalar_select %p394, %s22, 0
      %s396 = smul.addr %s395, 2
      %s397 = smul.addr %s393, 2
      %s398 = sadd.s32 %s396, %s397
      %s399 = smul.addr %s398, 8
      %s400 = scalar_lea.vmem %s6, %s399
      %s401 = smul.u32 2, %s22
      %p402 = scmp.lt.s32.totalorder %s21, 1
      %s403 = scalar_select %p402, %s21, 1
      %p404 = scmp.lt.s32.totalorder %s401, 1
      %s405 = scalar_select %p404, %s401, 1
      %s406 = smul.addr %s403, 2
      %s407 = sadd.s32 %s405, %s406
      %s408 = smul.addr %s407, 8
      %s409 = scalar_lea.vmem %s0, %s408
      %s410 = smul.u32 2, %s22
      %s411 = smul.u32 2, %s22
      %p412 = scmp.lt.s32.totalorder %s21, 1
      %s413 = scalar_select %p412, %s21, 1
      %p414 = scmp.lt.s32.totalorder %s411, 1
      %s415 = scalar_select %p414, %s411, 1
      %s416 = smul.addr %s413, 2
      %s417 = sadd.s32 %s415, %s416
      %s418 = smul.addr %s417, 8
      %s419 = scalar_lea.vmem %s1, %s418
      %s420 = smul.u32 2, %s22
      %s421 = smul.u32 2, %s22
      %p422 = scmp.lt.s32.totalorder %s21, 1
      %s423 = scalar_select %p422, %s21, 1
      %p424 = scmp.lt.s32.totalorder %s421, 1
      %s425 = scalar_select %p424, %s421, 1
      %s426 = smul.addr %s423, 2
      %s427 = sadd.s32 %s425, %s426
      %s428 = smul.addr %s427, 4
      %s429 = scalar_lea.vmem %s2, %s428
      %s430 = smul.u32 2, %s22
      %s431 = smul.u32 2, %s22
      %p432 = scmp.lt.s32.totalorder %s21, 1
      %s433 = scalar_select %p432, %s21, 1
      %p434 = scmp.lt.s32.totalorder %s431, 1
      %s435 = scalar_select %p434, %s431, 1
      %s436 = smul.addr %s433, 2
      %s437 = sadd.s32 %s435, %s436
      %s438 = smul.addr %s437, 8
      %s439 = scalar_lea.vmem %s3, %s438
      %s440 = smul.u32 2, %s22
      %s441 = smul.u32 2, %s22
      %p442 = scmp.lt.s32.totalorder %s21, 1
      %s443 = scalar_select %p442, %s21, 1
      %p444 = scmp.lt.s32.totalorder %s441, 1
      %s445 = scalar_select %p444, %s441, 1
      %s446 = smul.addr %s443, 4
      %s447 = sadd.s32 %s445, %s446
      %s448 = smul.addr %s447, 8
      %s449 = scalar_lea.vmem %s4, %s448
      %s450 = smul.u32 2, %s22
      %s451 = smul.u32 2, %s22
      %p452 = scmp.lt.s32.totalorder %s21, 1
      %s453 = scalar_select %p452, %s21, 1
      %p454 = scmp.lt.s32.totalorder %s451, 1
      %s455 = scalar_select %p454, %s451, 1
      %s456 = smul.addr %s453, 4
      %s457 = sadd.s32 %s455, %s456
      %s458 = smul.addr %s457, 8
      %s459 = scalar_lea.vmem %s5, %s458
      %s460 = smul.u32 2, %s22
      %p461 = scmp.lt.s32.totalorder %s21, 1
      %s462 = scalar_select %p461, %s21, 1
      %p463 = scmp.lt.s32.totalorder %s22, 0
      %s464 = scalar_select %p463, %s22, 0
      %s465 = smul.addr %s464, 2
      %s466 = smul.addr %s462, 2
      %s467 = sadd.s32 %s465, %s466
      %s468 = smul.addr %s467, 8
      %s469 = scalar_lea.vmem %s6, %s468
      %v470 = vld [vmem:[%s409] sm:$0xff]
      %v471 = vld [vmem:[%s409 + $0x8] sm:$0xff]
      %v472 = vld [vmem:[%s419] sm:$0xff]
      %v473 = vld [vmem:[%s419 + $0x8] sm:$0xff]
      %v474 = vld [vmem:[%s429] sm:$0xf]
      %v475 = vld [vmem:[%s429 + $0x4] sm:$0xf]
      %v476 = vunpack.c.l.bf16 %v474
      %v477 = vunpack.c.l.bf16 %v475
      %v478 = vld [vmem:[%s439] sm:$0xff]
      %v479 = vld [vmem:[%s439 + $0x8] sm:$0xff]
      %v480 = vxor.u32 %v470, 2147483648
      %v481 = vxor.u32 %v471, 2147483648
      %v482 = vmul.f32 %v480, 1.442695
      %v483 = vpow.pop %v482
      %v484 = vmul.f32 %v481, 1.442695
      %v485 = vpow.pop %v484
      %v486 = vadd.f32 %v483, 1.0
      %v487 = vadd.f32 %v485, 1.0
      %v488 = vrcp.pop %v486
      %v489 = vmul.f32 %v486, %v488
      %v490 = vsub.f32 1.0, %v489
      %v491 = vmul.f32 %v488, %v490
      %v492 = vadd.f32 %v488, %v491
      %vm493 = vweird.f32 %v486
      %vm494 = vweird.f32 %v488
      %vm495 = vmor %vm493, %vm494
      %v496 = vsel %vm495, %v488, %v492
      %v497 = vand.u32 2147483647, %v486
      %vm498 = vcmp.eq.f32.partialorder %v497, 8.507059e+37
      %v499 = vand.u32 %v486, 2147483648
      %v500 = vor.u32 1.1754944e-38, %v499
      %v501 = vsel %vm498, %v500, %v496
      %v502 = vmul.f32 1.0, %v501
      %v503 = vrcp.pop %v487
      %v504 = vmul.f32 %v487, %v503
      %v505 = vsub.f32 1.0, %v504
      %v506 = vmul.f32 %v503, %v505
      %v507 = vadd.f32 %v503, %v506
      %vm508 = vweird.f32 %v487
      %vm509 = vweird.f32 %v503
      %vm510 = vmor %vm508, %vm509
      %v511 = vsel %vm510, %v503, %v507
      %v512 = vand.u32 2147483647, %v487
      %vm513 = vcmp.eq.f32.partialorder %v512, 8.507059e+37
      %v514 = vand.u32 %v487, 2147483648
      %v515 = vor.u32 1.1754944e-38, %v514
      %v516 = vsel %vm513, %v515, %v511
      %v517 = vmul.f32 1.0, %v516
      %v518 = vmul.f32 %v472, %v476
      %v519 = vmul.f32 %v473, %v477
      %v520 = vmul.f32 %v502, %v518
      %v521 = vmul.f32 %v517, %v519
      %v522 = vadd.f32 %v520, %v521
      %v523 = vrot.slane %v522, 4
      %v524 = vadd.f32 %v522, %v523
      %v525 = vrot.slane %v524, 2
      %v526 = vadd.f32 %v524, %v525
      %v527 = vrot.slane %v526, 1
      %v528 = vadd.f32 %v526, %v527
      %529 = vst [vmem:[%s469] sm:$0x1] %v528
      %v530 = vmul.f32 %v502, %v502
      %v531 = vmul.f32 %v517, %v517
      %v532 = vmul.f32 %v530, %v476
      %v533 = vmul.f32 %v531, %v477
      %v534 = vadd.f32 %v532, %v533
      %v535 = vrot.slane %v534, 4
      %v536 = vadd.f32 %v534, %v535
      %v537 = vrot.slane %v536, 2
      %v538 = vadd.f32 %v536, %v537
      %v539 = vrot.slane %v538, 1
      %v540 = vadd.f32 %v538, %v539
      %541 = vst [vmem:[%s469 + $0x1] sm:$0x1] %v540
      %v542 = vadd.f32 %v518, %v519
      %v543 = vrot.slane %v542, 4
      %v544 = vadd.f32 %v542, %v543
      %v545 = vrot.slane %v544, 2
      %v546 = vadd.f32 %v544, %v545
      %v547 = vrot.slane %v546, 1
      %v548 = vadd.f32 %v546, %v547
      %549 = vst [vmem:[%s469 + $0x2] sm:$0x1] %v548
      %vm550 = vcmp.gt.f32.partialorder %v502, 0.5
      %vm551 = vcmp.gt.f32.partialorder %v517, 0.5
      %vm552 = vcmp.gt.f32.partialorder %v478, 0.5
      %vm553 = vcmp.gt.f32.partialorder %v479, 0.5
      %vm554 = vmand %vm550, %vm552
      %vm555 = vmand %vm551, %vm553
      %v556 = vsel %vm554, 1, 0
      %v557 = vsel %vm555, 1, 0
      %v558 = vcvt.s32.f32 %v556
      %v559 = vcvt.s32.f32 %v557
      %v560 = vld [vmem:[%s449] sm:$0xff]
      %v561 = vld [vmem:[%s449 + $0x8] sm:$0xff]
      %v562 = vxor.u32 %v560, 2147483648
      %v563 = vxor.u32 %v561, 2147483648
      %v564 = vmul.f32 %v562, 1.442695
      %v565 = vpow.pop %v564
      %v566 = vmul.f32 %v563, 1.442695
      %v567 = vpow.pop %v566
      %v568 = vadd.f32 %v565, 1.0
      %v569 = vadd.f32 %v567, 1.0
      %v570 = vrcp.pop %v568
      %v571 = vmul.f32 %v568, %v570
      %v572 = vsub.f32 1.0, %v571
      %v573 = vmul.f32 %v570, %v572
      %v574 = vadd.f32 %v570, %v573
      %vm575 = vweird.f32 %v568
      %vm576 = vweird.f32 %v570
      %vm577 = vmor %vm575, %vm576
      %v578 = vsel %vm577, %v570, %v574
      %v579 = vand.u32 2147483647, %v568
      %vm580 = vcmp.eq.f32.partialorder %v579, 8.507059e+37
      %v581 = vand.u32 %v568, 2147483648
      %v582 = vor.u32 1.1754944e-38, %v581
      %v583 = vsel %vm580, %v582, %v578
      %v584 = vmul.f32 1.0, %v583
      %v585 = vrcp.pop %v569
      %v586 = vmul.f32 %v569, %v585
      %v587 = vsub.f32 1.0, %v586
      %v588 = vmul.f32 %v585, %v587
      %v589 = vadd.f32 %v585, %v588
      %vm590 = vweird.f32 %v569
      %vm591 = vweird.f32 %v585
      %vm592 = vmor %vm590, %vm591
      %v593 = vsel %vm592, %v585, %v589
      %v594 = vand.u32 2147483647, %v569
      %vm595 = vcmp.eq.f32.partialorder %v594, 8.507059e+37
      %v596 = vand.u32 %v569, 2147483648
      %v597 = vor.u32 1.1754944e-38, %v596
      %v598 = vsel %vm595, %v597, %v593
      %v599 = vmul.f32 1.0, %v598
      %v600 = vld [vmem:[%s459] sm:$0xff]
      %v601 = vld [vmem:[%s459 + $0x8] sm:$0xff]
      %v602 = vmul.f32 %v600, %v558
      %v603 = vmul.f32 %v601, %v559
      %v604 = vmul.f32 %v584, %v602
      %v605 = vmul.f32 %v599, %v603
      %v606 = vadd.f32 %v604, %v605
      %v607 = vrot.slane %v606, 4
      %v608 = vadd.f32 %v606, %v607
      %v609 = vrot.slane %v608, 2
      %v610 = vadd.f32 %v608, %v609
      %v611 = vrot.slane %v610, 1
      %v612 = vadd.f32 %v610, %v611
      %613 = vst [vmem:[%s469 + $0x3] sm:$0x1] %v612
      %v614 = vmul.f32 %v584, %v584
      %v615 = vmul.f32 %v599, %v599
      %v616 = vmul.f32 %v614, %v558
      %v617 = vmul.f32 %v615, %v559
      %v618 = vadd.f32 %v616, %v617
      %v619 = vrot.slane %v618, 4
      %v620 = vadd.f32 %v618, %v619
      %v621 = vrot.slane %v620, 2
      %v622 = vadd.f32 %v620, %v621
      %v623 = vrot.slane %v622, 1
      %v624 = vadd.f32 %v622, %v623
      %625 = vst [vmem:[%s469 + $0x4] sm:$0x1] %v624
      %v626 = vadd.f32 %v602, %v603
      %v627 = vrot.slane %v626, 4
      %v628 = vadd.f32 %v626, %v627
      %v629 = vrot.slane %v628, 2
      %v630 = vadd.f32 %v628, %v629
      %v631 = vrot.slane %v630, 1
      %v632 = vadd.f32 %v630, %v631
      %633 = vst [vmem:[%s469 + $0x5] sm:$0x1] %v632
      %s634 = scalar_lea.vmem %s449, 16
      %v635 = vld [vmem:[%s634] sm:$0xff]
      %v636 = vld [vmem:[%s634 + $0x8] sm:$0xff]
      %v637 = vxor.u32 %v635, 2147483648
      %v638 = vxor.u32 %v636, 2147483648
      %v639 = vmul.f32 %v637, 1.442695
      %v640 = vpow.pop %v639
      %v641 = vmul.f32 %v638, 1.442695
      %v642 = vpow.pop %v641
      %v643 = vadd.f32 %v640, 1.0
      %v644 = vadd.f32 %v642, 1.0
      %v645 = vrcp.pop %v643
      %v646 = vmul.f32 %v643, %v645
      %v647 = vsub.f32 1.0, %v646
      %v648 = vmul.f32 %v645, %v647
      %v649 = vadd.f32 %v645, %v648
      %vm650 = vweird.f32 %v643
      %vm651 = vweird.f32 %v645
      %vm652 = vmor %vm650, %vm651
      %v653 = vsel %vm652, %v645, %v649
      %v654 = vand.u32 2147483647, %v643
      %vm655 = vcmp.eq.f32.partialorder %v654, 8.507059e+37
      %v656 = vand.u32 %v643, 2147483648
      %v657 = vor.u32 1.1754944e-38, %v656
      %v658 = vsel %vm655, %v657, %v653
      %v659 = vmul.f32 1.0, %v658
      %v660 = vrcp.pop %v644
      %v661 = vmul.f32 %v644, %v660
      %v662 = vsub.f32 1.0, %v661
      %v663 = vmul.f32 %v660, %v662
      %v664 = vadd.f32 %v660, %v663
      %vm665 = vweird.f32 %v644
      %vm666 = vweird.f32 %v660
      %vm667 = vmor %vm665, %vm666
      %v668 = vsel %vm667, %v660, %v664
      %v669 = vand.u32 2147483647, %v644
      %vm670 = vcmp.eq.f32.partialorder %v669, 8.507059e+37
      %v671 = vand.u32 %v644, 2147483648
      %v672 = vor.u32 1.1754944e-38, %v671
      %v673 = vsel %vm670, %v672, %v668
      %v674 = vmul.f32 1.0, %v673
      %s675 = scalar_lea.vmem %s459, 16
      %v676 = vld [vmem:[%s675] sm:$0xff]
      %v677 = vld [vmem:[%s675 + $0x8] sm:$0xff]
      %v678 = vmul.f32 %v676, %v558
      %v679 = vmul.f32 %v677, %v559
      %v680 = vmul.f32 %v659, %v678
      %v681 = vmul.f32 %v674, %v679
      %v682 = vadd.f32 %v680, %v681
      %v683 = vrot.slane %v682, 4
      %v684 = vadd.f32 %v682, %v683
      %v685 = vrot.slane %v684, 2
      %v686 = vadd.f32 %v684, %v685
      %v687 = vrot.slane %v686, 1
      %v688 = vadd.f32 %v686, %v687
      %689 = vst [vmem:[%s469 + $0x6] sm:$0x1] %v688
      %v690 = vmul.f32 %v659, %v659
      %v691 = vmul.f32 %v674, %v674
      %v692 = vmul.f32 %v690, %v558
      %v693 = vmul.f32 %v691, %v559
      %v694 = vadd.f32 %v692, %v693
      %v695 = vrot.slane %v694, 4
      %v696 = vadd.f32 %v694, %v695
      %v697 = vrot.slane %v696, 2
      %v698 = vadd.f32 %v696, %v697
      %v699 = vrot.slane %v698, 1
      %v700 = vadd.f32 %v698, %v699
      %701 = vst [vmem:[%s469 + $0x7] sm:$0x1] %v700
      %v702 = vadd.f32 %v678, %v679
      %v703 = vrot.slane %v702, 4
      %v704 = vadd.f32 %v702, %v703
      %v705 = vrot.slane %v704, 2
      %v706 = vadd.f32 %v704, %v705
      %v707 = vrot.slane %v706, 1
      %v708 = vadd.f32 %v706, %v707
      %709 = vst [vmem:[%s469 + $0x8] sm:$0x1] %v708
      %710 = vst [vmem:[%s469 + $0x9] sm:$0x7f] 0.0
      %p711 = scmp.lt.s32.totalorder %s21, 1
      %s712 = scalar_select %p711, %s21, 1
      %p713 = scmp.lt.s32.totalorder %s22, 0
      %s714 = scalar_select %p713, %s22, 0
      %s715 = smul.addr %s714, 2
      %s716 = smul.addr %s712, 2
      %s717 = sadd.s32 %s715, %s716
      %s718 = smul.addr %s717, 8
      %s719 = scalar_lea.vmem %s6, %s718
      // Predicated region
      $region45: #{pse_loss.1} parent=43 // pred_check
        %p720 = pneg %p217
      $region46: #{pse_loss.1} parent=43 // pred_check_branch
        %722 = sbr.rel (%p720) target = $region48
      $region47: #{pse_loss.1} parent=43 // pred_region
        _
      $region48: #{pse_loss.1} parent=43 // pred_fallthru
        _
    $region44: #{pse_loss.1} parent=5 // pred_fallthru
      _
    %p723 = scmp.le.s32.totalorder 2, %s12
    // Predicated region
    $region49: #{pse_loss.1} parent=5 // pred_check
      %p724 = pneg %p723
    $region50: #{pse_loss.1} parent=5 // pred_check_branch
      %726 = sbr.rel (%p724) target = $region52
    $region51: #{pse_loss.1} parent=5 // pred_region
      %s727 = ssub.s32 %s12, 2
      // Predicated region
      $region53: #{pse_loss.1} parent=51 // pred_check
        %p728 = pneg %p223
      $region54: #{pse_loss.1} parent=51 // pred_check_branch
        %730 = sbr.rel (%p728) target = $region56
      $region55: #{pse_loss.1} parent=51 // pred_region
        %p731 = scmp.lt.s32.totalorder %s23, 1
        %s732 = scalar_select %p731, %s23, 1
        %p733 = scmp.lt.s32.totalorder %s24, 0
        %s734 = scalar_select %p733, %s24, 0
        %s735 = smul.addr %s734, 2
        %s736 = smul.addr %s732, 2
        %s737 = sadd.s32 %s735, %s736
        %s738 = smul.addr %s737, 8
        %s739 = scalar_lea.vmem %s6, %s738
      $region56: #{pse_loss.1} parent=51 // pred_fallthru
        _
    $region52: #{pse_loss.1} parent=5 // pred_fallthru
      _
  $region6: #{pse_loss.1} parent=0 // loop_footer
    %s16 = sadd.s32 1, %s12
  $region7: #{pse_loss.1} parent=0 // loop_footer_branch
    %11 = sbr.rel target = $region3
  $region8: #{pse_loss.1} parent=0 // loop_exit
    _

</llo_original>
